<compile_context>
chip_gen: v7x
topology: tpu7x:2x2x1
jax: 0.10.0
libtpu: 0.0.40
codegen_flags: <defaults>
</compile_context>

<pallas_src>
import jax
import jax.numpy as jnp
from jax.experimental import pallas as pl
from jax.experimental.pallas import tpu as pltpu


# --------------------------------------------------------------------------- #
# Kernel
# --------------------------------------------------------------------------- #
def mlp_head_kernel(z_ref, gamma_ref, beta_ref, w_ref, b_ref, o_ref, zn_ref):
    j = pl.program_id(1)  # class-tile index (inner, "arbitrary" axis)

    # LayerNorm once per batch tile; reuse the normalized activations (bf16
    # scratch) for every class tile of this batch tile.
    @pl.when(j == 0)
    def _():
        z = z_ref[...].astype(jnp.float32)                     # (TB, D)
        d = z.shape[-1]
        # Single-pass statistics: two independent cross-lane reductions.
        s1 = jnp.sum(z, axis=-1, keepdims=True)                # (TB, 1)
        s2 = jnp.sum(z * z, axis=-1, keepdims=True)            # (TB, 1)
        mean = s1 * (1.0 / d)
        var = jnp.maximum(s2 * (1.0 / d) - mean * mean, 0.0)   # clamp cancellation
        inv = jax.lax.rsqrt(var + 1e-6)
        gamma = gamma_ref[...].astype(jnp.float32)             # (1, D)
        beta = beta_ref[...].astype(jnp.float32)               # (1, D)
        zn = (z - mean) * inv * gamma + beta                   # (TB, D) f32
        zn_ref[...] = zn.astype(zn_ref.dtype)                  # store bf16

    # Linear on the MXU: bf16 x bf16 -> f32 accumulate.
    y = jnp.dot(zn_ref[...], w_ref[...], preferred_element_type=jnp.float32)
    o_ref[...] = (y + b_ref[...].astype(jnp.float32)).astype(o_ref.dtype)


# --------------------------------------------------------------------------- #
# One-time parameter preparation (hoisted out of the per-call path)
# --------------------------------------------------------------------------- #
def prepare_mlp_head_params(w, b, gamma, beta):
    """Pad num_classes to a lane-dense multiple of 128 (zero columns) and cast
    the weight to bf16.  Run once when weights change, NOT per forward call.

    w: (D, C) = linear.weight.T,  b: (1, C),  gamma/beta: (1, D)
    Returns (w_bf16 (D, C_pad), b_f32 (1, C_pad), gamma, beta, num_classes).
    """
    D, C = w.shape
    C_pad = pl.cdiv(C, 128) * 128
    if C_pad != C:
        w = jnp.pad(w, ((0, 0), (0, C_pad - C)))
        b = jnp.pad(b, ((0, 0), (0, C_pad - C)))
    w_bf16 = w.astype(jnp.bfloat16)
    b_f32 = b.reshape(1, C_pad).astype(jnp.float32)
    return w_bf16, b_f32, gamma.reshape(1, D), beta.reshape(1, D), C


# --------------------------------------------------------------------------- #
# Tiling / VMEM budgeting helpers
# --------------------------------------------------------------------------- #
def _vmem_budget_bytes():
    cap = 64 << 20  # conservative default = v7x per-TensorCore VMEM
    try:
        cap = int(pltpu.get_tpu_info().vmem_capacity_bytes)
    except Exception:
        pass
    # Leave headroom for compiler-internal scratch: ~48 MiB on v7x, 96 MiB on v5e/v6e.
    return min(int(cap * 0.75), 96 << 20)


def _choose_tiles(B, D, C_pad, z_itemsize, out_itemsize, block_b, budget):
    align = 8 if z_itemsize >= 4 else 16           # sublane alignment (f32 / packed)
    TB = max(align, min(block_b, pl.cdiv(B, align) * align))
    while True:
        fixed = (2 * TB * D * z_itemsize           # z tiles (double-buffered)
                 + TB * D * 2                      # LN(z) scratch (bf16)
                 + 2 * 2 * D * 4)                  # gamma, beta (double-buffered f32)
        per_col = 2 * (D * 2 + TB * out_itemsize + 4)   # W(bf16) + out + bias, x2 buffers
        avail = budget - fixed
        if avail >= 128 * per_col or TB <= align:
            break
        TB = max(align, (TB // 2) // align * align)
    TC = min(C_pad, max(128, (avail // per_col) // 128 * 128))
    vmem_needed = fixed + TC * per_col
    return TB, TC, vmem_needed


# --------------------------------------------------------------------------- #
# Wrapper
# --------------------------------------------------------------------------- #
def mlp_head(z, gamma, beta, w_bf16, b, num_classes, *,
             block_b=512, out_dtype=jnp.float32):
    """y = LayerNorm(z) @ W + b.

    z: (B, D) f32 or bf16.  gamma/beta: (1, D).  w_bf16: (D, C_pad) bf16,
    b: (1, C_pad) f32 — both produced by prepare_mlp_head_params().
    Returns (B, num_classes) in out_dtype.
    """
    B, D = z.shape
    C_pad = w_bf16.shape[1]

    budget = _vmem_budget_bytes()
    zb = z.dtype.itemsize
    ob = jnp.dtype(out_dtype).itemsize
    TB, TC, vmem_needed = _choose_tiles(B, D, C_pad, zb, ob, block_b, budget)
    vmem_limit = min(int(vmem_needed * 1.5) + (2 << 20), budget)

    grid = (pl.cdiv(B, TB), pl.cdiv(C_pad, TC))

    cost = pl.CostEstimate(
        flops=2 * B * D * C_pad,
        transcendentals=B,                          # one rsqrt per row
        bytes_accessed=(B * D * zb                  # z read
                        + D * C_pad * 2             # W read (bf16)
                        + B * C_pad * ob),          # out write
    )

    out_padded = pl.pallas_call(
        mlp_head_kernel,
        out_shape=jax.ShapeDtypeStruct((B, C_pad), out_dtype),
        grid_spec=pltpu.PrefetchScalarGridSpec(
            num_scalar_prefetch=0,
            grid=grid,
            in_specs=[
                pl.BlockSpec((TB, D), lambda i, j: (i, 0)),   # z: constant over j
                pl.BlockSpec((1, D), lambda i, j: (0, 0)),    # gamma
                pl.BlockSpec((1, D), lambda i, j: (0, 0)),    # beta
                pl.BlockSpec((D, TC), lambda i, j: (0, j)),   # W: tiled over classes
                pl.BlockSpec((1, TC), lambda i, j: (0, j)),   # bias
            ],
            out_specs=pl.BlockSpec((TB, TC), lambda i, j: (i, j)),
            scratch_shapes=[pltpu.VMEM((TB, D), jnp.bfloat16)],   # LN(z), reused over j
        ),
        compiler_params=pltpu.CompilerParams(
            dimension_semantics=("parallel", "arbitrary"),
            vmem_limit_bytes=vmem_limit,
        ),
        cost_estimate=cost,
    )(z, gamma, beta, w_bf16, b)

    # Strip class padding (no batch padding was added).
    return out_padded[:, :num_classes]


# --------------------------------------------------------------------------- #
# Demo / correctness check
# --------------------------------------------------------------------------- #
if __name__ == "__main__":
    # Small shapes consistent with the module (embed_dim, num_classes scaled down).
    # C=100 deliberately non-128-multiple to exercise the class-padding path.
    B, D, C = 16, 256, 100

    key = jax.random.PRNGKey(0)
    kz, kw, kb = jax.random.split(key, 3)

    z = jax.random.normal(kz, (B, D), dtype=jnp.float32)

    # Deterministic parameter init (shapes follow nn.Linear / nn.LayerNorm).
    bound = 1.0 / (D ** 0.5)
    w = jax.random.uniform(kw, (D, C), minval=-bound, maxval=bound,
                           dtype=jnp.float32)                 # linear1.weight.T
    b = jax.random.uniform(kb, (1, C), minval=-bound, maxval=bound,
                           dtype=jnp.float32)                 # linear1.bias
    gamma = jnp.ones((1, D), dtype=jnp.float32)               # norm.weight
    beta = jnp.zeros((1, D), dtype=jnp.float32)               # norm.bias

    # One-time parameter prep (pad C to 128-multiple, bf16 weights).
    w_p, b_p, gamma_p, beta_p, n_cls = prepare_mlp_head_params(w, b, gamma, beta)

    out = mlp_head(z, gamma_p, beta_p, w_p, b_p, n_cls)
    jax.block_until_ready(out)
    assert out.shape == (B, C)

    # Reference check in plain JAX (f32 everywhere).
    mean = jnp.mean(z, axis=-1, keepdims=True)
    var = jnp.mean((z - mean) ** 2, axis=-1, keepdims=True)
    z_ln = (z - mean) / jnp.sqrt(var + 1e-6) * gamma + beta
    ref = z_ln @ w + b
    # bf16 MXU operands -> relax tolerance vs the pure-f32 reference.
    assert jnp.allclose(out, ref, atol=2e-2, rtol=2e-2), "mismatch vs reference"

    print("KERNEL_OK")
</pallas_src>

<mosaic_0001>
module attributes {stable_mosaic.version = 11 : i64} {
  func.func @mlp_head_kernel(%arg0: i32, %arg1: i32, %arg2: memref<16x256xf32, #tpu.memory_space<vmem>>, %arg3: memref<1x256xf32, #tpu.memory_space<vmem>>, %arg4: memref<1x256xf32, #tpu.memory_space<vmem>>, %arg5: memref<256x128xbf16, #tpu.memory_space<vmem>>, %arg6: memref<1x128xf32, #tpu.memory_space<vmem>>, %arg7: memref<16x128xf32, #tpu.memory_space<vmem>>, %arg8: memref<16x256xbf16, #tpu.memory_space<vmem>>) attributes {dimension_semantics = [#tpu.dimension_semantics<parallel>, #tpu.dimension_semantics<arbitrary>], iteration_bounds = array<i64: 1, 1>, scalar_prefetch = 0 : i64, scratch_operands = 1 : i64, tpu.core_type = #tpu.core_type<tc>, window_params = [{transform_indices = @transform_0, window_bounds = array<i64: 16, 256>}, {pipeline_mode = #tpu.pipeline_mode<synchronous>, transform_indices = @transform_1, window_bounds = array<i64: 1, 256>}, {pipeline_mode = #tpu.pipeline_mode<synchronous>, transform_indices = @transform_2, window_bounds = array<i64: 1, 256>}, {transform_indices = @transform_3, window_bounds = array<i64: 256, 128>}, {transform_indices = @transform_4, window_bounds = array<i64: 1, 128>}, {transform_indices = @transform_5, window_bounds = array<i64: 16, 128>}]} {
    %c0_i32 = arith.constant 0 : i32
    %0 = arith.cmpi eq, %arg1, %c0_i32 : i32
    %1 = arith.extui %0 : i1 to i32
    %c0_i32_0 = arith.constant 0 : i32
    %2 = arith.cmpi ne, %1, %c0_i32_0 : i32
    scf.if %2 {
      %c0_8 = arith.constant 0 : index
      %c0_9 = arith.constant 0 : index
      %10 = vector.load %arg2[%c0_8, %c0_9] : memref<16x256xf32, #tpu.memory_space<vmem>>, vector<16x256xf32>
      %cst_10 = arith.constant dense<0.000000e+00> : vector<16xf32>
      %11 = vector.multi_reduction <add>, %10, %cst_10 [1] : vector<16x256xf32> to vector<16xf32>
      %12 = vector.shape_cast %11 : vector<16xf32> to vector<16x1xf32>
      %13 = arith.mulf %10, %10 : vector<16x256xf32>
      %cst_11 = arith.constant dense<0.000000e+00> : vector<16xf32>
      %14 = vector.multi_reduction <add>, %13, %cst_11 [1] : vector<16x256xf32> to vector<16xf32>
      %15 = vector.shape_cast %14 : vector<16xf32> to vector<16x1xf32>
      %cst_12 = arith.constant 3.906250e-03 : f32
      %16 = vector.broadcast %cst_12 : f32 to vector<16x1xf32>
      %17 = arith.mulf %12, %16 : vector<16x1xf32>
      %cst_13 = arith.constant 3.906250e-03 : f32
      %18 = vector.broadcast %cst_13 : f32 to vector<16x1xf32>
      %19 = arith.mulf %15, %18 : vector<16x1xf32>
      %20 = arith.mulf %17, %17 : vector<16x1xf32>
      %21 = arith.subf %19, %20 : vector<16x1xf32>
      %cst_14 = arith.constant 0.000000e+00 : f32
      %22 = vector.broadcast %cst_14 : f32 to vector<16x1xf32>
      %23 = arith.maximumf %21, %22 : vector<16x1xf32>
      %cst_15 = arith.constant 9.99999997E-7 : f32
      %24 = vector.broadcast %cst_15 : f32 to vector<16x1xf32>
      %25 = arith.addf %23, %24 : vector<16x1xf32>
      %26 = math.rsqrt %25 : vector<16x1xf32>
      %c0_16 = arith.constant 0 : index
      %c0_17 = arith.constant 0 : index
      %27 = vector.load %arg3[%c0_16, %c0_17] : memref<1x256xf32, #tpu.memory_space<vmem>>, vector<1x256xf32>
      %c0_18 = arith.constant 0 : index
      %c0_19 = arith.constant 0 : index
      %28 = vector.load %arg4[%c0_18, %c0_19] : memref<1x256xf32, #tpu.memory_space<vmem>>, vector<1x256xf32>
      %29 = vector.broadcast %17 : vector<16x1xf32> to vector<16x256xf32>
      %30 = arith.subf %10, %29 : vector<16x256xf32>
      %31 = vector.broadcast %26 : vector<16x1xf32> to vector<16x256xf32>
      %32 = arith.mulf %30, %31 : vector<16x256xf32>
      %33 = vector.broadcast %27 : vector<1x256xf32> to vector<16x256xf32>
      %34 = arith.mulf %32, %33 : vector<16x256xf32>
      %35 = vector.broadcast %28 : vector<1x256xf32> to vector<16x256xf32>
      %36 = arith.addf %34, %35 : vector<16x256xf32>
      %37 = arith.truncf %36 : vector<16x256xf32> to vector<16x256xbf16>
      %c0_20 = arith.constant 0 : index
      %c0_21 = arith.constant 0 : index
      %38 = vector.load %arg8[%c0_20, %c0_21] : memref<16x256xbf16, #tpu.memory_space<vmem>>, vector<16x256xbf16>
      tpu.vector_store %arg8[%c0_20, %c0_21], %37 {strides = array<i32>} : memref<16x256xbf16, #tpu.memory_space<vmem>>, vector<16x256xbf16>,
    } else {
    }
    %c0 = arith.constant 0 : index
    %c0_1 = arith.constant 0 : index
    %3 = vector.load %arg8[%c0, %c0_1] : memref<16x256xbf16, #tpu.memory_space<vmem>>, vector<16x256xbf16>
    %c0_2 = arith.constant 0 : index
    %c0_3 = arith.constant 0 : index
    %4 = vector.load %arg5[%c0_2, %c0_3] : memref<256x128xbf16, #tpu.memory_space<vmem>>, vector<256x128xbf16>
    %cst = arith.constant dense<0.000000e+00> : vector<16x128xf32>
    %5 = tpu.matmul %3, %4, %cst {dimension_numbers = #tpu.dot_dimension_numbers<[1], [0], [0], [1], [0, 0, 1, 1], [], []>} : vector<16x256xbf16>, vector<256x128xbf16>, vector<16x128xf32> -> vector<16x128xf32>
    %c0_4 = arith.constant 0 : index
    %c0_5 = arith.constant 0 : index
    %6 = vector.load %arg6[%c0_4, %c0_5] : memref<1x128xf32, #tpu.memory_space<vmem>>, vector<1x128xf32>
    %7 = vector.broadcast %6 : vector<1x128xf32> to vector<16x128xf32>
    %8 = arith.addf %5, %7 : vector<16x128xf32>
    %c0_6 = arith.constant 0 : index
    %c0_7 = arith.constant 0 : index
    %9 = vector.load %arg7[%c0_6, %c0_7] : memref<16x128xf32, #tpu.memory_space<vmem>>, vector<16x128xf32>
    tpu.vector_store %arg7[%c0_6, %c0_7], %8 {strides = array<i32>} : memref<16x128xf32, #tpu.memory_space<vmem>>, vector<16x128xf32>,
    return
  }
  func.func @transform_0(%arg0: i32, %arg1: i32) -> (i32, i32) {
    %c0_i32 = arith.constant 0 : i32
    %c0_i32_0 = arith.constant 0 : i32
    return %arg0, %c0_i32 : i32, i32
  }
  func.func @transform_1(%arg0: i32, %arg1: i32) -> (i32, i32) {
    %c0_i32 = arith.constant 0 : i32
    %c0_i32_0 = arith.constant 0 : i32
    %c0_i32_1 = arith.constant 0 : i32
    return %c0_i32, %c0_i32_0 : i32, i32
  }
  func.func @transform_2(%arg0: i32, %arg1: i32) -> (i32, i32) {
    %c0_i32 = arith.constant 0 : i32
    %c0_i32_0 = arith.constant 0 : i32
    %c0_i32_1 = arith.constant 0 : i32
    return %c0_i32, %c0_i32_0 : i32, i32
  }
  func.func @transform_3(%arg0: i32, %arg1: i32) -> (i32, i32) {
    %c0_i32 = arith.constant 0 : i32
    %c0_i32_0 = arith.constant 0 : i32
    return %c0_i32, %arg1 : i32, i32
  }
  func.func @transform_4(%arg0: i32, %arg1: i32) -> (i32, i32) {
    %c0_i32 = arith.constant 0 : i32
    %c0_i32_0 = arith.constant 0 : i32
    return %c0_i32, %arg1 : i32, i32
  }
  func.func @transform_5(%arg0: i32, %arg1: i32) -> (i32, i32) {
    %c0_i32 = arith.constant 0 : i32
    return %arg0, %arg1 : i32, i32
  }
}

</mosaic_0001>

<llo_original>
// kernel: tpu_custom_call.1
$region0: #{tpu_custom_call.1}
  #allocation0 [shape = 'u32[]', space=smem, size = 0x4, offset = 0x4, fixed_abs, tag = 'smem constant byte address 0x4 - core index']
  #allocation1 [shape = 'u32[144,128]{1,0:T(1,128)}', space=vmem, size = 0x12000, scoped, tag = 'internal scratch']
  #allocation2 [shape = 'bf16[16,256]{1,0:T(16,128)(2,1)}', space=vmem, size = 0x2000, scoped, tag = 'scratch operand']
  %s0 = inlined_call_operand.hbm [shape: f32[16,256], index: 0, kind: input, shape index: {}]
  %s1 = inlined_call_operand.vmem [shape: f32[1,256], index: 1, kind: input, shape index: {}]
  %s2 = inlined_call_operand.vmem [shape: f32[1,256], index: 2, kind: input, shape index: {}]
  %s3 = inlined_call_operand.hbm [shape: bf16[256,128], index: 3, kind: input, shape index: {}]
  %s4 = inlined_call_operand.vmem [shape: f32[1,128], index: 4, kind: input, shape index: {}]
  %s5 = inlined_call_operand.hbm [shape: f32[16,128], index: 5, kind: output, shape index: {}]
  %s6 = sld [smem:[#allocation0]]
  $region42: #{tpu_custom_call.1} parent=0
    _
  %s8 = ssub.s32 1, %s6
  %s9 = scalar_select 0, %s8, %s6
  $region1: #{tpu_custom_call.1} parent=0
    #allocation3 [shape = 'u8[16384]{0}', space=vmem, size = 0x4000, scoped, tag = 'input window, operand 0, single buffered']
    #allocation4 [shape = 's32[1]{0}', space=sflag, size = 0x4, scoped, tag = 'scoped memory for tpu_custom_call.1']
    #allocation5 [shape = 's32[1]{0}', space=sflag, size = 0x4, scoped, tag = 'scoped memory for tpu_custom_call.1']
    #allocation6 [shape = 'u8[65536]{0}', space=vmem, size = 0x10000, scoped, tag = 'input window, operand 3, single buffered']
    #allocation7 [shape = 's32[1]{0}', space=sflag, size = 0x4, scoped, tag = 'scoped memory for tpu_custom_call.1']
    #allocation8 [shape = 'u8[8192]{0}', space=vmem, size = 0x2000, scoped, tag = 'output window, operand 0, single buffered']
    %10 = vsyncpa [#allocation4], 0
    %11 = vsyncpa [#allocation7], 0
    %12 = vsyncpa [#allocation5], 0
    // Predicated region
    $region2: #{tpu_custom_call.1} parent=1 // pred_check
      _
    $region3: #{tpu_custom_call.1} parent=1 // pred_check_branch
      %14 = sbr.rel (0) target = $region5
    $region4: #{tpu_custom_call.1} parent=1 // pred_region
      %s16 = ssub.s32 512, 512
      %17 = vsyncadd [#allocation4], %s16
      %s18 = sshll.u32 [#allocation3], 4
      %s19 = int_to_ptr.vmem [resolvable:$true] %s18
      %24 = dma.hbm_to_vmem [thread:$0]  %s0, 512, %s19, [#allocation4], 256, 256, 16
    $region5: #{tpu_custom_call.1} parent=1 // pred_fallthru
      _
    // Predicated region
    $region6: #{tpu_custom_call.1} parent=1 // pred_check
      _
    $region7: #{tpu_custom_call.1} parent=1 // pred_check_branch
      %26 = sbr.rel (0) target = $region9
    $region8: #{tpu_custom_call.1} parent=1 // pred_region
      _
    $region9: #{tpu_custom_call.1} parent=1 // pred_fallthru
      _
    // Predicated region
    $region10: #{tpu_custom_call.1} parent=1 // pred_check
      _
    $region11: #{tpu_custom_call.1} parent=1 // pred_check_branch
      %28 = sbr.rel (0) target = $region13
    $region12: #{tpu_custom_call.1} parent=1 // pred_region
      _
    $region13: #{tpu_custom_call.1} parent=1 // pred_fallthru
      _
    // Predicated region
    $region14: #{tpu_custom_call.1} parent=1 // pred_check
      _
    $region15: #{tpu_custom_call.1} parent=1 // pred_check_branch
      %30 = sbr.rel (0) target = $region17
    $region16: #{tpu_custom_call.1} parent=1 // pred_region
      %s32 = ssub.s32 2048, 2048
      %33 = vsyncadd [#allocation7], %s32
      %s34 = sshll.u32 [#allocation6], 4
      %s35 = int_to_ptr.vmem [resolvable:$true] %s34
      %40 = dma.hbm_to_vmem [thread:$0]  %s3, 2048, %s35, [#allocation7], 64, 64, 4
    $region17: #{tpu_custom_call.1} parent=1 // pred_fallthru
      _
    // Predicated region
    $region18: #{tpu_custom_call.1} parent=1 // pred_check
      _
    $region19: #{tpu_custom_call.1} parent=1 // pred_check_branch
      %42 = sbr.rel (0) target = $region21
    $region20: #{tpu_custom_call.1} parent=1 // pred_region
      _
    $region21: #{tpu_custom_call.1} parent=1 // pred_fallthru
      _
    // Predicated region
    $region22: #{tpu_custom_call.1} parent=1 // pred_check
      _
    $region23: #{tpu_custom_call.1} parent=1 // pred_check_branch
      %44 = sbr.rel (0) target = $region25
    $region24: #{tpu_custom_call.1} parent=1 // pred_region
      %45 = dma.done [#allocation4], 512
    $region25: #{tpu_custom_call.1} parent=1 // pred_fallthru
      _
    // Predicated region
    $region26: #{tpu_custom_call.1} parent=1 // pred_check
      _
    $region27: #{tpu_custom_call.1} parent=1 // pred_check_branch
      %47 = sbr.rel (0) target = $region29
    $region28: #{tpu_custom_call.1} parent=1 // pred_region
      %48 = dma.done [#allocation7], 2048
    $region29: #{tpu_custom_call.1} parent=1 // pred_fallthru
      _
    %p50 = scmp.eq.s32.totalorder 0, 0
    // Predicated region
    $region30: #{tpu_custom_call.1} parent=1 // pred_check
      %p51 = pneg %p50
    $region31: #{tpu_custom_call.1} parent=1 // pred_check_branch
      %53 = sbr.rel (%p51) target = $region33
    $region32: #{tpu_custom_call.1} parent=1 // pred_region
      %v54 = vld [vmem:[#allocation3] sm:$0xff]
      %v55 = vld [vmem:[#allocation3 + $0x8] sm:$0xff]
      %v56 = vld [vmem:[#allocation3 + $0x10] sm:$0xff]
      %v57 = vld [vmem:[#allocation3 + $0x18] sm:$0xff]
      %v58 = vadd.f32 %v54, %v55
      %59 = vadd.xlane.f32.xlu0 %v58
      %v60 = vpop.xlane.xlu0 %59
      %v61 = vadd.f32 %v56, %v57
      %62 = vadd.xlane.f32.xlu0 %v61
      %v63 = vpop.xlane.xlu0 %62
      %v64 = vmul.f32 %v54, %v54
      %v65 = vmul.f32 %v55, %v55
      %v66 = vmul.f32 %v56, %v56
      %v67 = vmul.f32 %v57, %v57
      %v68 = vadd.f32 %v64, %v65
      %69 = vadd.xlane.f32.xlu0 %v68
      %v70 = vpop.xlane.xlu0 %69
      %v71 = vadd.f32 %v66, %v67
      %72 = vadd.xlane.f32.xlu0 %v71
      %v73 = vpop.xlane.xlu0 %72
      %v74 = vmul.f32 %v60, 0.00390625
      %v75 = vmul.f32 %v63, 0.00390625
      %v76 = vmul.f32 %v70, 0.00390625
      %v77 = vmul.f32 %v73, 0.00390625
      %v78 = vmul.f32 %v74, %v74
      %v79 = vmul.f32 %v75, %v75
      %v80 = vsub.f32 %v76, %v78
      %v81 = vsub.f32 %v77, %v79
      %v82 = vmax.f32 %v80, 0.0
      %v83 = vmax.f32 %v81, 0.0
      %v84 = vadd.f32 %v82, 1e-06
      %v85 = vadd.f32 %v83, 1e-06
      %v86 = vrsqrt.pop %v84
      %v87 = vrsqrt.pop %v85
      %v88 = vld [vmem:[%s1] sm:$0x3]
      %v89 = vld [vmem:[%s2] sm:$0x3]
      %v90 = vsub.f32 %v54, %v74
      %v91 = vsub.f32 %v55, %v74
      %v92 = vsub.f32 %v56, %v75
      %v93 = vsub.f32 %v57, %v75
      %v94 = vmul.f32 %v90, %v86
      %v95 = vmul.f32 %v91, %v86
      %v96 = vmul.f32 %v92, %v87
      %v97 = vmul.f32 %v93, %v87
      %v99 = vlaneseq
      %v100 = vshrl.u32 %v99, 7
      %v101 = vsub.s32 0, %v100
      %v102 = vrot.slane %v88, %v101
      %v103 = vlaneseq
      %v104 = vshrl.u32 %v103, 7
      %v105 = vsub.s32 1, %v104
      %v106 = vrot.slane %v88, %v105
      %v109 = vmul.f32 %v94, %v102
      %v110 = vmul.f32 %v95, %v106
      %v111 = vmul.f32 %v96, %v102
      %v112 = vmul.f32 %v97, %v106
      %v114 = vlaneseq
      %v115 = vshrl.u32 %v114, 7
      %v116 = vsub.s32 0, %v115
      %v117 = vrot.slane %v89, %v116
      %v118 = vlaneseq
      %v119 = vshrl.u32 %v118, 7
      %v120 = vsub.s32 1, %v119
      %v121 = vrot.slane %v89, %v120
      %v124 = vadd.f32 %v109, %v117
      %v125 = vadd.f32 %v110, %v121
      %v126 = vadd.f32 %v111, %v117
      %v127 = vadd.f32 %v112, %v121
      %v128 = vpack.c.bf16 %v126, %v124
      %v129 = vpack.c.bf16 %v127, %v125
      %130 = vst [vmem:[#allocation2] sm:$0xff] %v128
      %131 = vst [vmem:[#allocation2 + $0x8] sm:$0xff] %v129
    $region33: #{tpu_custom_call.1} parent=1 // pred_fallthru
      _
    %v132 = vld [vmem:[#allocation2] sm:$0xff]
    %v133 = vld [vmem:[#allocation2 + $0x8] sm:$0xff]
    %v134 = vld [vmem:[#allocation6] sm:$0xf]
    %v135 = vld [vmem:[#allocation6 + $0x4] sm:$0xf]
    %v136 = vld [vmem:[#allocation6 + $0x8] sm:$0xf]
    %v137 = vld [vmem:[#allocation6 + $0xc] sm:$0xf]
    %v138 = vld [vmem:[#allocation6 + $0x10] sm:$0xf]
    %v139 = vld [vmem:[#allocation6 + $0x14] sm:$0xf]
    %v140 = vld [vmem:[#allocation6 + $0x18] sm:$0xf]
    %v141 = vld [vmem:[#allocation6 + $0x1c] sm:$0xf]
    %v142 = vld [vmem:[#allocation6 + $0x20] sm:$0xf]
    %v143 = vld [vmem:[#allocation6 + $0x24] sm:$0xf]
    %v144 = vld [vmem:[#allocation6 + $0x28] sm:$0xf]
    %v145 = vld [vmem:[#allocation6 + $0x2c] sm:$0xf]
    %v146 = vld [vmem:[#allocation6 + $0x30] sm:$0xf]
    %v147 = vld [vmem:[#allocation6 + $0x34] sm:$0xf]
    %v148 = vld [vmem:[#allocation6 + $0x38] sm:$0xf]
    %v149 = vld [vmem:[#allocation6 + $0x3c] sm:$0xf]
    %v150 = vld [vmem:[#allocation6 + $0x40] sm:$0xf]
    %v151 = vld [vmem:[#allocation6 + $0x44] sm:$0xf]
    %v152 = vld [vmem:[#allocation6 + $0x48] sm:$0xf]
    %v153 = vld [vmem:[#allocation6 + $0x4c] sm:$0xf]
    %v154 = vld [vmem:[#allocation6 + $0x50] sm:$0xf]
    %v155 = vld [vmem:[#allocation6 + $0x54] sm:$0xf]
    %v156 = vld [vmem:[#allocation6 + $0x58] sm:$0xf]
    %v157 = vld [vmem:[#allocation6 + $0x5c] sm:$0xf]
    %v158 = vld [vmem:[#allocation6 + $0x60] sm:$0xf]
    %v159 = vld [vmem:[#allocation6 + $0x64] sm:$0xf]
    %v160 = vld [vmem:[#allocation6 + $0x68] sm:$0xf]
    %v161 = vld [vmem:[#allocation6 + $0x6c] sm:$0xf]
    %v162 = vld [vmem:[#allocation6 + $0x70] sm:$0xf]
    %v163 = vld [vmem:[#allocation6 + $0x74] sm:$0xf]
    %v164 = vld [vmem:[#allocation6 + $0x78] sm:$0xf]
    %v165 = vld [vmem:[#allocation6 + $0x7c] sm:$0xf]
    %v166 = vld [vmem:[%s4] sm:$0x1]
    %v168 = vlaneseq
    %v169 = vshrl.u32 %v168, 7
    %v170 = vsub.s32 0, %v169
    %v171 = vrot.slane %v166, %v170
    %v205 = vunpack.c.l.b16 %v134
    %v206 = vunpack.c.l.b16 %v135
    %v207 = vunpack.c.l.b16 %v136
    %v208 = vunpack.c.l.b16 %v137
    %v209 = vunpack.c.l.b16 %v138
    %v210 = vunpack.c.l.b16 %v139
    %v211 = vunpack.c.l.b16 %v140
    %v212 = vunpack.c.l.b16 %v141
    %v213 = vunpack.c.l.b16 %v142
    %v214 = vunpack.c.l.b16 %v143
    %v215 = vunpack.c.l.b16 %v144
    %v216 = vunpack.c.l.b16 %v145
    %v217 = vunpack.c.l.b16 %v146
    %v218 = vunpack.c.l.b16 %v147
    %v219 = vunpack.c.l.b16 %v148
    %v220 = vunpack.c.l.b16 %v149
    %v221 = vunpack.c.l.b16 %v150
    %v222 = vunpack.c.l.b16 %v151
    %v223 = vunpack.c.l.b16 %v152
    %v224 = vunpack.c.l.b16 %v153
    %v225 = vunpack.c.l.b16 %v154
    %v226 = vunpack.c.l.b16 %v155
    %v227 = vunpack.c.l.b16 %v156
    %v228 = vunpack.c.l.b16 %v157
    %v229 = vunpack.c.l.b16 %v158
    %v230 = vunpack.c.l.b16 %v159
    %v231 = vunpack.c.l.b16 %v160
    %v232 = vunpack.c.l.b16 %v161
    %v233 = vunpack.c.l.b16 %v162
    %v234 = vunpack.c.l.b16 %v163
    %v235 = vunpack.c.l.b16 %v164
    %v236 = vunpack.c.l.b16 %v165
    %v237 = vpack.c.b16 %v206, %v205
    %v238 = vpack.c.b16 %v208, %v207
    %v239 = vpack.c.b16 %v210, %v209
    %v240 = vpack.c.b16 %v212, %v211
    %v241 = vpack.c.b16 %v214, %v213
    %v242 = vpack.c.b16 %v216, %v215
    %v243 = vpack.c.b16 %v218, %v217
    %v244 = vpack.c.b16 %v220, %v219
    %v245 = vpack.c.b16 %v222, %v221
    %v246 = vpack.c.b16 %v224, %v223
    %v247 = vpack.c.b16 %v226, %v225
    %v248 = vpack.c.b16 %v228, %v227
    %v249 = vpack.c.b16 %v230, %v229
    %v250 = vpack.c.b16 %v232, %v231
    %v251 = vpack.c.b16 %v234, %v233
    %v252 = vpack.c.b16 %v236, %v235
    %269 = vmatprep.subr.bf16.mxu0 0
    %270 = vmatpush1.bf16.msra.mxu0 %v237
    %271 = vmatprep.subr.bf16.mxu0 0
    %272 = vmatpush1.bf16.msra.mxu0 %v238
    %273 = vmatprep.subr.bf16.mxu0 0
    %274 = vmatpush1.bf16.msra.mxu0 %v239
    %275 = vmatprep.subr.bf16.mxu0 0
    %276 = vmatpush1.bf16.msra.mxu0 %v240
    %277 = vmatprep.subr.bf16.mxu0 0
    %278 = vmatpush1.bf16.msra.mxu0 %v241
    %279 = vmatprep.subr.bf16.mxu0 0
    %280 = vmatpush1.bf16.msra.mxu0 %v242
    %281 = vmatprep.subr.bf16.mxu0 0
    %282 = vmatpush1.bf16.msra.mxu0 %v243
    %283 = vmatprep.subr.bf16.mxu0 0
    %284 = vmatpush1.bf16.msra.mxu0 %v244
    %285 = vmatprep.subr.bf16.mxu0 0
    %286 = vmatpush1.bf16.msra.mxu0 %v245
    %287 = vmatprep.subr.bf16.mxu0 0
    %288 = vmatpush1.bf16.msra.mxu0 %v246
    %289 = vmatprep.subr.bf16.mxu0 0
    %290 = vmatpush1.bf16.msra.mxu0 %v247
    %291 = vmatprep.subr.bf16.mxu0 0
    %292 = vmatpush1.bf16.msra.mxu0 %v248
    %293 = vmatprep.subr.bf16.mxu0 0
    %294 = vmatpush1.bf16.msra.mxu0 %v249
    %295 = vmatprep.subr.bf16.mxu0 0
    %296 = vmatpush1.bf16.msra.mxu0 %v250
    %297 = vmatprep.subr.bf16.mxu0 0
    %298 = vmatpush1.bf16.msra.mxu0 %v251
    %299 = vmatprep.subr.bf16.mxu0 0
    %300 = vmatpush1.bf16.msra.mxu0 %v252
    %301 = vmatprep.mubr.bf16.mxu0 %v133
    %302 = vmatmul.mubr.bf16.gmra.mrb[0].mxu0 %v132
    %v303 = vpop.f32.mrb[0].mxu0
    %v304 = vadd.f32 %v171, %v303
    %v305 = vpop.f32.mrb[0].mxu0
    %v306 = vpop.f32.mrb[0].mxu0
    %v307 = vadd.f32 %v171, %v306
    %v308 = vpop.f32.mrb[0].mxu0
    %309 = vdwg.mxu0
    %310 = vst [vmem:[#allocation8] sm:$0xff] %v304
    %311 = vst [vmem:[#allocation8 + $0x8] sm:$0xff] %v307
    // Predicated region
    $region34: #{tpu_custom_call.1} parent=1 // pred_check
      _
    $region35: #{tpu_custom_call.1} parent=1 // pred_check_branch
      %313 = sbr.rel (0) target = $region37
    $region36: #{tpu_custom_call.1} parent=1 // pred_region
      %s315 = ssub.s32 256, 256
      %316 = vsyncadd [#allocation5], %s315
      %s317 = sshll.u32 [#allocation8], 4
      %s318 = int_to_ptr.vmem [resolvable:$true] %s317
      %323 = dma.vmem_to_hbm [thread:$0]  %s318, 256, %s5, [#allocation5], 128, 128, 8
    $region37: #{tpu_custom_call.1} parent=1 // pred_fallthru
      _
    // Predicated region
    $region38: #{tpu_custom_call.1} parent=1 // pred_check
      _
    $region39: #{tpu_custom_call.1} parent=1 // pred_check_branch
      %325 = sbr.rel (0) target = $region41
    $region40: #{tpu_custom_call.1} parent=1 // pred_region
      %326 = dma.done [#allocation5], 256
    $region41: #{tpu_custom_call.1} parent=1 // pred_fallthru
      _
    %327 = vsyncpa [#allocation4], 1
    %328 = vsyncpa [#allocation7], 1
    %329 = vsyncpa [#allocation5], 1

</llo_original>
